<compile_context>
chip_gen: v6e
topology: v6e:2x2x1
jax: 0.10.0
libtpu: 0.0.40
codegen_flags: <defaults>
</compile_context>

<pallas_src>
import functools

import jax
import jax.numpy as jnp
from jax.experimental import pallas as pl
from jax.experimental.pallas import tpu as pltpu

_LANE = 128
_TILE_ROWS_MAX = 8192     # 8192 * 128 * 4 B = 4 MiB per f32 block
_MIN_SPLIT_ROWS = 1024    # <= 512 KiB f32: single full-extent block is fine


def _round_up(x, m):
    return ((x + m - 1) // m) * m


def _pick_tile_rows(rows):
    """Choose block rows: full extent for tiny inputs, otherwise aim for >= 4
    grid steps (pipeline overlap + v7x 2-TC sharding), capped at 4 MiB/block."""
    if rows <= _MIN_SPLIT_ROWS:
        return rows                               # block == full array dims
    tr = min(_TILE_ROWS_MAX, _round_up(pl.cdiv(rows, 4), 8))
    return max(tr, 8)                             # multiple of 8 (sublane)


def _compute_dtype_for(x_dtype):
    """bf16 compute only for bf16 streams on chips with bf16 VPU/EUP
    (v6e / v7x); f32 everywhere else (v5e has no bf16 vector/EUP path)."""
    if jnp.dtype(x_dtype) == jnp.dtype(jnp.bfloat16):
        try:
            kind = jax.devices()[0].device_kind.lower()
        except Exception:  # pragma: no cover - defensive
            kind = ""
        if ("v6" in kind) or ("v7" in kind):
            return jnp.bfloat16
    return jnp.float32


def _gamma_kernel(gamma_ref, x_ref, o_ref, *, compute_dtype):
    # gamma_ref: (1, 1) scalar in SMEM; x_ref / o_ref: (TR, 128) VMEM tiles.
    gamma = gamma_ref[0, 0].astype(compute_dtype)
    x = x_ref[...].astype(compute_dtype)
    # x ** gamma via exp(gamma * log(x)); guard non-positive inputs (0**g = 0).
    safe = jnp.maximum(x, jnp.array(1e-30, dtype=compute_dtype))
    powed = jnp.exp(gamma * jnp.log(safe))
    # exp(..) > 0, so the lower clamp is the x <= 0 select; upper clamp = min.
    out = jnp.where(
        x <= 0.0,
        jnp.array(0.0, dtype=compute_dtype),
        jnp.minimum(powed, jnp.array(1.0, dtype=compute_dtype)),
    )
    o_ref[...] = out.astype(o_ref.dtype)


def _adjust_gamma_2d(x2d, gamma_arr):
    """x2d: (rows, 128) array (any float dtype). Returns same shape/dtype."""
    rows, lane = x2d.shape
    tr = _pick_tile_rows(rows)
    grid = (pl.cdiv(rows, tr),)
    compute_dtype = _compute_dtype_for(x2d.dtype)

    # in + out, double-buffered, plus headroom for compiler scratch.
    tile_bytes = tr * lane * jnp.dtype(x2d.dtype).itemsize
    vmem_limit = min(2 * 2 * tile_bytes + (4 << 20), 64 << 20)

    kernel = functools.partial(_gamma_kernel, compute_dtype=compute_dtype)
    return pl.pallas_call(
        kernel,
        out_shape=jax.ShapeDtypeStruct((rows, lane), x2d.dtype),
        grid=grid,
        in_specs=[
            pl.BlockSpec(memory_space=pltpu.SMEM),        # gamma scalar
            pl.BlockSpec((tr, lane), lambda i: (i, 0)),   # image tile
        ],
        out_specs=pl.BlockSpec((tr, lane), lambda i: (i, 0)),
        compiler_params=pltpu.CompilerParams(
            dimension_semantics=("parallel",),
            vmem_limit_bytes=vmem_limit,
        ),
    )(gamma_arr, x2d)


def adjust_gamma_pallas(img, gamma):
    """img: float NCHW array with values in [0, 1]. gamma: python float or
    f32 device scalar/array. Returns array of same shape/dtype as img."""
    orig_shape = img.shape
    orig_dtype = img.dtype
    gamma_arr = jnp.asarray(gamma, dtype=jnp.float32).reshape(1, 1)

    flat = img.reshape(-1)            # free view of contiguous data, no pad copy
    n = flat.shape[0]
    n_bulk = (n // _LANE) * _LANE

    if n_bulk == n:
        # Common case: total size divisible by 128 -> no padding, no extra copies.
        out2d = _adjust_gamma_2d(flat.reshape(-1, _LANE), gamma_arr)
        return out2d.reshape(orig_shape)

    # Ragged case: Pallas handles the divisible bulk; the < 128-element tail is
    # done in plain JAX (negligible work), avoiding a whole-array pad.
    parts = []
    if n_bulk:
        bulk_out = _adjust_gamma_2d(flat[:n_bulk].reshape(-1, _LANE), gamma_arr)
        parts.append(bulk_out.reshape(-1))
    g = gamma_arr[0, 0]               # works for traced or concrete gamma
    tail = flat[n_bulk:].astype(jnp.float32)
    tail_out = jnp.where(
        tail <= 0.0,
        jnp.float32(0.0),
        jnp.minimum(jnp.exp(g * jnp.log(jnp.maximum(tail, jnp.float32(1e-30)))),
                    jnp.float32(1.0)),
    ).astype(orig_dtype)
    parts.append(tail_out)
    # TODO(synk): absorb the tail into the kernel with a masked final-block
    # store to avoid this concatenate (extra output copy) for ragged shapes.
    return jnp.concatenate(parts).reshape(orig_shape)


class GammaPallas:
    """Mirror of the PyTorch Gamma(RepeatableTransform) module."""

    def __init__(self, gamma_range=(0.5, 2.0), seed=0):
        self.gamma_range = gamma_range
        self._key = jax.random.PRNGKey(seed)
        self.current_gamma_arr = None
        self.step()

    def step(self):
        # np.random.uniform(*gamma_range) -> deterministic JAX-based draw.
        # Kept as a persistent (1,1) f32 device array: no host round-trip or
        # blocking sync per step/forward, and no per-step recompiles.
        self._key, sub = jax.random.split(self._key)
        lo, hi = self.gamma_range
        self.current_gamma_arr = jax.random.uniform(
            sub, (1, 1), dtype=jnp.float32, minval=lo, maxval=hi)

    @property
    def current_gamma(self):
        # Host float for inspection / reference math only (forces a sync).
        return float(self.current_gamma_arr[0, 0])

    def forward(self, img, mask):
        img = adjust_gamma_pallas(img, self.current_gamma_arr)
        return (img, mask)

    __call__ = forward


if __name__ == "__main__":
    key = jax.random.PRNGKey(0)
    k_img, k_mask, k_mid, k_bf = jax.random.split(key, 4)

    tform = GammaPallas(gamma_range=(0.5, 2.0), seed=0)
    gamma_f = tform.current_gamma    # host float for the references below

    # 1) Small NCHW image/mask pair (single-block path).
    img = jax.random.uniform(k_img, (2, 4, 16, 16), dtype=jnp.float32)
    mask = (jax.random.uniform(k_mask, (2, 1, 16, 16)) > 0.5).astype(jnp.float32)
    out_img, out_mask = tform(img, mask)
    out_img = jax.block_until_ready(out_img)
    out_mask = jax.block_until_ready(out_mask)
    ref = jnp.clip(jnp.power(img, gamma_f), 0.0, 1.0)
    assert out_img.shape == img.shape and out_img.dtype == img.dtype
    assert jnp.allclose(out_img, ref, atol=1e-5, rtol=1e-5)
    assert jnp.array_equal(out_mask, mask)

    # 2) Mid-sized image: exercises the multi-step tiled grid (>= 4 steps).
    img_mid = jax.random.uniform(k_mid, (2, 3, 256, 384), dtype=jnp.float32)
    out_mid = jax.block_until_ready(
        adjust_gamma_pallas(img_mid, tform.current_gamma_arr))
    ref_mid = jnp.clip(jnp.power(img_mid, gamma_f), 0.0, 1.0)
    assert jnp.allclose(out_mid, ref_mid, atol=1e-5, rtol=1e-5)

    # 3) Ragged-tail shape (total elements not divisible by 128).
    img2 = jax.random.uniform(key, (1, 3, 15, 15), dtype=jnp.float32)
    out2 = jax.block_until_ready(
        adjust_gamma_pallas(img2, tform.current_gamma_arr))
    ref2 = jnp.clip(jnp.power(img2, gamma_f), 0.0, 1.0)
    assert jnp.allclose(out2, ref2, atol=1e-5, rtol=1e-5)

    # 4) bf16 I/O (bf16 compute on v6e/v7x, f32 compute elsewhere).
    img_bf = jax.random.uniform(
        k_bf, (2, 4, 32, 32), dtype=jnp.float32).astype(jnp.bfloat16)
    out_bf = jax.block_until_ready(
        adjust_gamma_pallas(img_bf, tform.current_gamma_arr))
    ref_bf = jnp.clip(jnp.power(img_bf.astype(jnp.float32), gamma_f), 0.0, 1.0)
    assert out_bf.shape == img_bf.shape and out_bf.dtype == jnp.bfloat16
    assert jnp.allclose(out_bf.astype(jnp.float32), ref_bf, atol=3e-2)

    print("KERNEL_OK")
</pallas_src>

<mosaic_0001>
module attributes {stable_mosaic.version = 11 : i64} {
  func.func @_gamma_kernel(%arg0: i32, %arg1: memref<1x1xf32, #tpu.memory_space<smem>>, %arg2: memref<16x128xf32, #tpu.memory_space<vmem>>, %arg3: memref<16x128xf32, #tpu.memory_space<vmem>>) attributes {dimension_semantics = [#tpu.dimension_semantics<parallel>], iteration_bounds = array<i64: 1>, scalar_prefetch = 0 : i64, scratch_operands = 0 : i64, tpu.core_type = #tpu.core_type<tc>, window_params = [{transform_indices = @transform_0, window_bounds = array<i64: 1, 1>}, {transform_indices = @transform_1, window_bounds = array<i64: 16, 128>}, {transform_indices = @transform_2, window_bounds = array<i64: 16, 128>}]} {
    %c0 = arith.constant 0 : index
    %c0_0 = arith.constant 0 : index
    %0 = memref.load %arg1[%c0, %c0_0] : memref<1x1xf32, #tpu.memory_space<smem>>
    %c0_1 = arith.constant 0 : index
    %c0_2 = arith.constant 0 : index
    %1 = vector.load %arg2[%c0_1, %c0_2] : memref<16x128xf32, #tpu.memory_space<vmem>>, vector<16x128xf32>
    %cst = arith.constant 1.000000e-30 : f32
    %2 = vector.broadcast %cst : f32 to vector<16x128xf32>
    %3 = arith.maximumf %1, %2 : vector<16x128xf32>
    %4 = math.log %3 : vector<16x128xf32>
    %5 = vector.broadcast %0 : f32 to vector<16x128xf32>
    %6 = arith.mulf %5, %4 : vector<16x128xf32>
    %7 = math.exp %6 : vector<16x128xf32>
    %cst_3 = arith.constant 0.000000e+00 : f32
    %8 = vector.broadcast %cst_3 : f32 to vector<16x128xf32>
    %9 = arith.cmpf ole, %1, %8 : vector<16x128xf32>
    %cst_4 = arith.constant 1.000000e+00 : f32
    %10 = vector.broadcast %cst_4 : f32 to vector<16x128xf32>
    %11 = arith.minimumf %7, %10 : vector<16x128xf32>
    %cst_5 = arith.constant 0.000000e+00 : f32
    %12 = vector.broadcast %cst_5 : f32 to vector<16x128xf32>
    %13 = arith.select %9, %12, %11 : vector<16x128xi1>, vector<16x128xf32>
    %c0_6 = arith.constant 0 : index
    %c0_7 = arith.constant 0 : index
    %14 = vector.load %arg3[%c0_6, %c0_7] : memref<16x128xf32, #tpu.memory_space<vmem>>, vector<16x128xf32>
    tpu.vector_store %arg3[%c0_6, %c0_7], %13 {strides = array<i32>} : memref<16x128xf32, #tpu.memory_space<vmem>>, vector<16x128xf32>,
    return
  }
  func.func @transform_0(%arg0: i32) -> (i32, i32) {
    %c0_i32 = arith.constant 0 : i32
    %c0_i32_0 = arith.constant 0 : i32
    %c0_i32_1 = arith.constant 0 : i32
    return %c0_i32, %c0_i32_0 : i32, i32
  }
  func.func @transform_1(%arg0: i32) -> (i32, i32) {
    %c0_i32 = arith.constant 0 : i32
    %c0_i32_0 = arith.constant 0 : i32
    return %arg0, %c0_i32 : i32, i32
  }
  func.func @transform_2(%arg0: i32) -> (i32, i32) {
    %c0_i32 = arith.constant 0 : i32
    %c0_i32_0 = arith.constant 0 : i32
    return %arg0, %c0_i32 : i32, i32
  }
}

</mosaic_0001>

<llo_original>
// kernel: tpu_custom_call.1
$region0: #{tpu_custom_call.1}
  #allocation0 [shape = 'u32[]', space=smem, size = 0x4, offset = 0x4, fixed_abs, tag = 'smem constant byte address 0x4 - core index']
  #allocation1 [shape = 'u32[144,128]{1,0:T(1,128)}', space=vmem, size = 0x12000, scoped, tag = 'internal scratch']
  #allocation2 [shape = 'f32[1,1]{1,0:T(1,128)S(6)}', space=smem, size = 0x200, scoped, tag = 'scoped memory for tpu_custom_call.1']
  %s0 = inlined_call_operand.<no memory space> [shape: f32[1,1], index: 0, kind: input, shape index: {}]
  %s1 = inlined_call_operand.hbm [shape: f32[16,128], index: 1, kind: input, shape index: {}]
  %s2 = inlined_call_operand.hbm [shape: f32[16,128], index: 2, kind: output, shape index: {}]
  %s3 = sld [smem:[#allocation0]]
  $region22: #{tpu_custom_call.1} parent=0
    _
  %s5 = ssub.s32 1, %s3
  %s6 = scalar_select 0, %s5, %s3
  %7 = sst [smem:[#allocation2]] %s0
  $region1: #{tpu_custom_call.1} parent=0
    #allocation3 [shape = 'u8[8192]{0}', space=vmem, size = 0x2000, scoped, tag = 'input window, operand 1, single buffered']
    #allocation4 [shape = 's32[1]{0}', space=sflag, size = 0x4, scoped, tag = 'scoped memory for tpu_custom_call.1']
    #allocation5 [shape = 's32[1]{0}', space=sflag, size = 0x4, scoped, tag = 'scoped memory for tpu_custom_call.1']
    #allocation6 [shape = 'u8[8192]{0}', space=vmem, size = 0x2000, scoped, tag = 'output window, operand 0, single buffered']
    %8 = vsyncpa [#allocation4], 0
    %9 = vsyncpa [#allocation5], 0
    // Predicated region
    $region2: #{tpu_custom_call.1} parent=1 // pred_check
      _
    $region3: #{tpu_custom_call.1} parent=1 // pred_check_branch
      %11 = sbr.rel (0) target = $region5
    $region4: #{tpu_custom_call.1} parent=1 // pred_region
      _
    $region5: #{tpu_custom_call.1} parent=1 // pred_fallthru
      _
    // Predicated region
    $region6: #{tpu_custom_call.1} parent=1 // pred_check
      _
    $region7: #{tpu_custom_call.1} parent=1 // pred_check_branch
      %13 = sbr.rel (0) target = $region9
    $region8: #{tpu_custom_call.1} parent=1 // pred_region
      %s15 = ssub.s32 256, 256
      %16 = vsyncadd [#allocation4], %s15
      %s17 = sshll.u32 [#allocation3], 4
      %s18 = int_to_ptr.vmem [resolvable:$true] %s17
      %23 = dma.hbm_to_vmem [thread:$0]  %s1, 256, %s18, [#allocation4], 128, 128, 8
    $region9: #{tpu_custom_call.1} parent=1 // pred_fallthru
      _
    // Predicated region
    $region10: #{tpu_custom_call.1} parent=1 // pred_check
      _
    $region11: #{tpu_custom_call.1} parent=1 // pred_check_branch
      %25 = sbr.rel (0) target = $region13
    $region12: #{tpu_custom_call.1} parent=1 // pred_region
      %26 = dma.done [#allocation4], 256
    $region13: #{tpu_custom_call.1} parent=1 // pred_fallthru
      _
    %s27 = sld [smem:[#allocation2]]
    %v28 = vld [vmem:[#allocation3] sm:$0xff]
    %v29 = vld [vmem:[#allocation3 + $0x8] sm:$0xff]
    %v30 = vmax.f32 %v28, 1e-30
    %v31 = vmax.f32 %v29, 1e-30
    %v32 = vlog2.pop %v30
    %v33 = vmul.f32 %v32, 0.6931472
    %v34 = vlog2.pop %v31
    %v35 = vmul.f32 %v34, 0.6931472
    %v36 = vstv %s27
    %v37 = vmul.f32 %v36, %v33
    %v38 = vmul.f32 %v36, %v35
    %v39 = vmul.f32 %v37, 1.442695
    %v40 = vpow.pop %v39
    %v41 = vmul.f32 %v38, 1.442695
    %v42 = vpow.pop %v41
    %vm43 = vcmp.le.f32.partialorder %v28, 0.0
    %vm44 = vcmp.le.f32.partialorder %v29, 0.0
    %v45 = vmin.f32 %v40, 1.0
    %v46 = vmin.f32 %v42, 1.0
    %v47 = vsel %vm43, 0.0, %v45
    %v48 = vsel %vm44, 0.0, %v46
    %49 = vst [vmem:[#allocation6] sm:$0xff] %v47
    %50 = vst [vmem:[#allocation6 + $0x8] sm:$0xff] %v48
    // Predicated region
    $region14: #{tpu_custom_call.1} parent=1 // pred_check
      _
    $region15: #{tpu_custom_call.1} parent=1 // pred_check_branch
      %52 = sbr.rel (0) target = $region17
    $region16: #{tpu_custom_call.1} parent=1 // pred_region
      %s54 = ssub.s32 256, 256
      %55 = vsyncadd [#allocation5], %s54
      %s56 = sshll.u32 [#allocation6], 4
      %s57 = int_to_ptr.vmem [resolvable:$true] %s56
      %62 = dma.vmem_to_hbm [thread:$0]  %s57, 256, %s2, [#allocation5], 128, 128, 8
    $region17: #{tpu_custom_call.1} parent=1 // pred_fallthru
      _
    // Predicated region
    $region18: #{tpu_custom_call.1} parent=1 // pred_check
      _
    $region19: #{tpu_custom_call.1} parent=1 // pred_check_branch
      %64 = sbr.rel (0) target = $region21
    $region20: #{tpu_custom_call.1} parent=1 // pred_region
      %65 = dma.done [#allocation5], 256
    $region21: #{tpu_custom_call.1} parent=1 // pred_fallthru
      _
    %66 = vsyncpa [#allocation4], 1
    %67 = vsyncpa [#allocation5], 1

</llo_original>
